<compile_context>
chip_gen: v6e
topology: v6e:2x2x1
jax: 0.10.0
libtpu: 0.0.40
codegen_flags: <defaults>
</compile_context>

<pallas_src>
import functools

import jax
import jax.numpy as jnp
from jax import lax
from jax.experimental import pallas as pl
from jax.experimental.pallas import tpu as pltpu


def _round_up(x: int, m: int) -> int:
    return ((x + m - 1) // m) * m


def _log_power_kernel(x_ref, out_ref, acc_ref, *, total_t: int, block_t: int):
    """Grid = (row_blocks, time_blocks).

    x_ref:   (R, block_t) tile of the (rows, T) input.
    out_ref: (R, 1) per-row loss block, resident across the time axis.
    acc_ref: (R, 128) f32 scratch holding lane-partial sums of squares.
    """
    k = pl.program_id(1)

    # Re-initialize the accumulator at the start of every row block's sweep.
    @pl.when(k == 0)
    def _():
        acc_ref[...] = jnp.zeros_like(acc_ref)

    r = x_ref.shape[0]
    n_chunks = block_t // 128
    has_tail = (total_t % block_t) != 0   # static: only emit mask code if needed

    def chunk_body(j, part):
        off = pl.multiple_of(j * 128, 128)
        e = x_ref[:, pl.ds(off, 128)].astype(jnp.float32)          # (R, 128)
        if has_tail:
            col = (k * block_t + off
                   + lax.broadcasted_iota(jnp.int32, (r, 128), 1))
            e = jnp.where(col < total_t, e, 0.0)                   # exact for x^2 sum
        return part + e * e                                        # pure VPU

    part = lax.fori_loop(0, n_chunks, chunk_body,
                         jnp.zeros((r, 128), jnp.float32),
                         unroll=min(8, n_chunks))
    acc_ref[...] += part

    # Finalize on the last time tile: one cross-lane reduce + log10 per row.
    @pl.when(k == pl.num_programs(1) - 1)
    def _():
        power = jnp.sum(acc_ref[...], axis=-1, keepdims=True)      # (R, 1)
        out_ref[...] = 10.0 * jnp.log10(power + 1e-3)


def log_power_loss(est: jax.Array,
                   gt: jax.Array | None = None,
                   *,
                   block_rows: int | None = None,
                   block_t: int | None = None,
                   use_pallas: bool | None = None,
                   validate_gt: bool = True) -> jax.Array:
    """est, gt: (B, C, T). Returns per-batch loss of shape (B,) (float32)."""
    B, C, T = est.shape

    # --- "gt must be 0" assert (kept out of the hot kernel) ------------------
    if gt is not None:
        assert gt.shape == (B, C, T)
        if validate_gt:
            gtmax = jnp.max(jnp.abs(gt))          # cheap fused XLA reduce
            try:
                gtmax_f = float(gtmax)            # concrete only in eager mode
            except (jax.errors.ConcretizationTypeError, TypeError):
                gtmax_f = None
                # TODO(synk): under jit, replicate the assert with jax.experimental.checkify.
            if gtmax_f is not None and gtmax_f >= 1e-6:
                raise AssertionError("This loss must only be used when gt = 0")

    # --- tiny-input fast path: XLA fusion beats pallas_call launch overhead --
    if use_pallas is None:
        use_pallas = (B * C * T) >= (1 << 16)
    if not use_pallas:
        e = est.astype(jnp.float32).reshape(B * C, T)
        loss = 10.0 * jnp.log10(jnp.sum(e * e, axis=-1) + 1e-3)
        return loss.reshape(B, C).mean(axis=-1)

    rows = B * C
    x = est.reshape(rows, T)                   # free: merges leading dims

    # Row tile: multiple of 8 (sublanes) unless rows < 8; capped at 128 so the
    # per-chunk register carry (R x 128 f32) stays within the vreg budget.
    if block_rows is None:
        R = rows if rows < 8 else min(128, (rows // 8) * 8)
    else:
        R = block_rows
    n_r = pl.cdiv(rows, R)

    # Time tile: multiple of 128 lanes, ~4 MiB per block.
    if block_t is None:
        bt = (4 * 1024 * 1024) // max(1, R * est.dtype.itemsize)
        bt = max(128, (bt // 128) * 128)
        block_t = min(_round_up(T, 128), bt)
    else:
        block_t = min(_round_up(T, 128), _round_up(block_t, 128))
    n_t = pl.cdiv(T, block_t)

    kernel = functools.partial(_log_power_kernel, total_t=T, block_t=block_t)

    per_row = pl.pallas_call(
        kernel,
        out_shape=jax.ShapeDtypeStruct((rows, 1), jnp.float32),
        grid_spec=pltpu.PrefetchScalarGridSpec(
            num_scalar_prefetch=0,
            grid=(n_r, n_t),
            in_specs=[pl.BlockSpec((R, block_t), lambda i, k: (i, k))],
            out_specs=pl.BlockSpec((R, 1), lambda i, k: (i, 0)),
            scratch_shapes=[pltpu.VMEM((R, 128), jnp.float32)],
        ),
        compiler_params=pltpu.CompilerParams(
            dimension_semantics=("parallel", "arbitrary"),
        ),
    )(x)

    # Tiny epilogue in XLA: per-batch mean over channels.
    return per_row[:, 0].reshape(B, C).mean(axis=-1)


def _reference(est):
    B, C, T = est.shape
    e = est.reshape(B * C, T).astype(jnp.float32)
    loss = 10.0 * jnp.log10(jnp.sum(e ** 2, axis=-1) + 1e-3)
    return jnp.mean(loss.reshape(B, C), axis=-1)


if __name__ == "__main__":
    key = jax.random.PRNGKey(0)
    k1, k2, k3 = jax.random.split(key, 3)

    # 1) Small (B, C, T) = (2, 4, 16), forced Pallas path (single tile + tail mask).
    B, C, T = 2, 4, 16
    est = jax.random.normal(k1, (B, C, T), dtype=jnp.float32)
    gt = jnp.zeros((B, C, T), dtype=jnp.float32)   # loss requires gt == 0
    out = jax.block_until_ready(log_power_loss(est, gt, use_pallas=True))
    ref = _reference(est)
    assert out.shape == (B,)
    assert jnp.allclose(out, ref, rtol=1e-5, atol=1e-5), (out, ref)

    # 2) Multi-time-block reduction with a partial last time block (T=700, bt=256).
    T2 = 700
    est2 = jax.random.normal(k2, (B, C, T2), dtype=jnp.float32)
    gt2 = jnp.zeros((B, C, T2), dtype=jnp.float32)
    out2 = jax.block_until_ready(
        log_power_loss(est2, gt2, use_pallas=True, block_t=256))
    ref2 = _reference(est2)
    assert jnp.allclose(out2, ref2, rtol=1e-5, atol=1e-5), (out2, ref2)

    # 3) Rows not a multiple of 8 (partial row block) + multiple time blocks.
    B3, C3, T3 = 3, 3, 200
    est3 = jax.random.normal(k3, (B3, C3, T3), dtype=jnp.float32)
    out3 = jax.block_until_ready(
        log_power_loss(est3, None, use_pallas=True, block_t=128))
    ref3 = _reference(est3)
    assert out3.shape == (B3,)
    assert jnp.allclose(out3, ref3, rtol=1e-5, atol=1e-5), (out3, ref3)

    print("KERNEL_OK")
</pallas_src>

<mosaic_0001>
module attributes {stable_mosaic.version = 11 : i64} {
  func.func @_log_power_kernel(%arg0: i32, %arg1: i32, %arg2: memref<8x128xf32, #tpu.memory_space<vmem>>, %arg3: memref<8x1xf32, #tpu.memory_space<vmem>>, %arg4: memref<8x128xf32, #tpu.memory_space<vmem>>) attributes {dimension_semantics = [#tpu.dimension_semantics<parallel>, #tpu.dimension_semantics<arbitrary>], iteration_bounds = array<i64: 1, 1>, scalar_prefetch = 0 : i64, scratch_operands = 1 : i64, tpu.core_type = #tpu.core_type<tc>, window_params = [{transform_indices = @transform_0, window_bounds = array<i64: 8, 128>}, {transform_indices = @transform_1, window_bounds = array<i64: 8, 1>}]} {
    %c0_i32 = arith.constant 0 : i32
    %0 = arith.cmpi eq, %arg1, %c0_i32 : i32
    %1 = arith.extui %0 : i1 to i32
    %c0_i32_0 = arith.constant 0 : i32
    %2 = arith.cmpi ne, %1, %c0_i32_0 : i32
    scf.if %2 {
      %cst_10 = arith.constant 0.000000e+00 : f32
      %25 = vector.broadcast %cst_10 : f32 to vector<8x128xf32>
      %c0_11 = arith.constant 0 : index
      %c0_12 = arith.constant 0 : index
      %26 = vector.load %arg4[%c0_11, %c0_12] : memref<8x128xf32, #tpu.memory_space<vmem>>, vector<8x128xf32>
      tpu.vector_store %arg4[%c0_11, %c0_12], %25 {strides = array<i32>} : memref<8x128xf32, #tpu.memory_space<vmem>>, vector<8x128xf32>,
    } else {
    }
    %cst = arith.constant 0.000000e+00 : f32
    %3 = vector.broadcast %cst : f32 to vector<8x128xf32>
    %c0_i32_1 = arith.constant 0 : i32
    %c128_i32 = arith.constant 128 : i32
    %4 = arith.muli %c0_i32_1, %c128_i32 : i32
    %5 = tpu.assume_multiple %4, 128 : i32
    %c0 = arith.constant 0 : index
    %6 = arith.index_cast %5 : i32 to index
    %7 = vector.load %arg2[%c0, %6] : memref<8x128xf32, #tpu.memory_space<vmem>>, vector<8x128xf32>
    %c128_i32_2 = arith.constant 128 : i32
    %8 = arith.muli %arg1, %c128_i32_2 : i32
    %9 = arith.addi %8, %5 : i32
    %10 = tpu.iota {dimensions = array<i32: 1>} : vector<8x128xi32>
    %11 = vector.broadcast %9 : i32 to vector<8x128xi32>
    %12 = arith.addi %11, %10 : vector<8x128xi32>
    %c16_i32 = arith.constant 16 : i32
    %13 = vector.broadcast %c16_i32 : i32 to vector<8x128xi32>
    %14 = arith.cmpi slt, %12, %13 : vector<8x128xi32>
    %cst_3 = arith.constant 0.000000e+00 : f32
    %15 = vector.broadcast %cst_3 : f32 to vector<8x128xf32>
    %16 = arith.select %14, %7, %15 : vector<8x128xi1>, vector<8x128xf32>
    %17 = arith.mulf %16, %16 : vector<8x128xf32>
    %18 = arith.addf %3, %17 : vector<8x128xf32>
    %c1_i32 = arith.constant 1 : i32
    %c0_4 = arith.constant 0 : index
    %c0_5 = arith.constant 0 : index
    %19 = vector.load %arg4[%c0_4, %c0_5] : memref<8x128xf32, #tpu.memory_space<vmem>>, vector<8x128xf32>
    %20 = arith.addf %19, %18 : vector<8x128xf32>
    %c0_6 = arith.constant 0 : index
    %c0_7 = arith.constant 0 : index
    %21 = vector.load %arg4[%c0_6, %c0_7] : memref<8x128xf32, #tpu.memory_space<vmem>>, vector<8x128xf32>
    tpu.vector_store %arg4[%c0_6, %c0_7], %20 {strides = array<i32>} : memref<8x128xf32, #tpu.memory_space<vmem>>, vector<8x128xf32>,
    %c0_i32_8 = arith.constant 0 : i32
    %22 = arith.cmpi eq, %arg1, %c0_i32_8 : i32
    %23 = arith.extui %22 : i1 to i32
    %c0_i32_9 = arith.constant 0 : i32
    %24 = arith.cmpi ne, %23, %c0_i32_9 : i32
    scf.if %24 {
      %c0_10 = arith.constant 0 : index
      %c0_11 = arith.constant 0 : index
      %25 = vector.load %arg4[%c0_10, %c0_11] : memref<8x128xf32, #tpu.memory_space<vmem>>, vector<8x128xf32>
      %cst_12 = arith.constant dense<0.000000e+00> : vector<8xf32>
      %26 = vector.multi_reduction <add>, %25, %cst_12 [1] : vector<8x128xf32> to vector<8xf32>
      %27 = vector.shape_cast %26 : vector<8xf32> to vector<8x1xf32>
      %cst_13 = arith.constant 1.000000e-03 : f32
      %28 = vector.broadcast %cst_13 : f32 to vector<8x1xf32>
      %29 = arith.addf %27, %28 : vector<8x1xf32>
      %30 = math.log %29 : vector<8x1xf32>
      %cst_14 = arith.constant 0.434294492 : f32
      %31 = vector.broadcast %cst_14 : f32 to vector<8x1xf32>
      %32 = arith.mulf %30, %31 : vector<8x1xf32>
      %cst_15 = arith.constant 1.000000e+01 : f32
      %33 = vector.broadcast %cst_15 : f32 to vector<8x1xf32>
      %34 = arith.mulf %33, %32 : vector<8x1xf32>
      %c0_16 = arith.constant 0 : index
      %c0_17 = arith.constant 0 : index
      %35 = vector.load %arg3[%c0_16, %c0_17] : memref<8x1xf32, #tpu.memory_space<vmem>>, vector<8x1xf32>
      tpu.vector_store %arg3[%c0_16, %c0_17], %34 {strides = array<i32>} : memref<8x1xf32, #tpu.memory_space<vmem>>, vector<8x1xf32>,
    } else {
    }
    return
  }
  func.func @transform_0(%arg0: i32, %arg1: i32) -> (i32, i32) {
    %c0_i32 = arith.constant 0 : i32
    return %arg0, %arg1 : i32, i32
  }
  func.func @transform_1(%arg0: i32, %arg1: i32) -> (i32, i32) {
    %c0_i32 = arith.constant 0 : i32
    %c0_i32_0 = arith.constant 0 : i32
    return %arg0, %c0_i32 : i32, i32
  }
}

</mosaic_0001>

<llo_original>
// kernel: tpu_custom_call.1
$region0: #{tpu_custom_call.1}
  #allocation0 [shape = 'u32[]', space=smem, size = 0x4, offset = 0x4, fixed_abs, tag = 'smem constant byte address 0x4 - core index']
  #allocation1 [shape = 'u32[144,128]{1,0:T(1,128)}', space=vmem, size = 0x12000, scoped, tag = 'internal scratch']
  #allocation2 [shape = 'f32[8,128]{1,0:T(8,128)}', space=vmem, size = 0x1000, scoped, tag = 'scratch operand']
  %s0 = inlined_call_operand.hbm [shape: f32[8,16], index: 0, kind: input, shape index: {}]
  %s1 = inlined_call_operand.vmem [shape: f32[8,1], index: 1, kind: output, shape index: {}]
  %s2 = sld [smem:[#allocation0]]
  $region26: #{tpu_custom_call.1} parent=0
    _
  %s4 = ssub.s32 1, %s2
  %s5 = scalar_select 0, %s4, %s2
  $region1: #{tpu_custom_call.1} parent=0
    #allocation3 [shape = 'u8[4096]{0}', space=vmem, size = 0x1000, scoped, tag = 'input window, operand 0, single buffered']
    #allocation4 [shape = 's32[1]{0}', space=sflag, size = 0x4, scoped, tag = 'scoped memory for tpu_custom_call.1']
    %6 = vsyncpa [#allocation4], 0
    // Predicated region
    $region2: #{tpu_custom_call.1} parent=1 // pred_check
      _
    $region3: #{tpu_custom_call.1} parent=1 // pred_check_branch
      %8 = sbr.rel (0) target = $region5
    $region4: #{tpu_custom_call.1} parent=1 // pred_region
      %s10 = ssub.s32 128, 128
      %11 = vsyncadd [#allocation4], %s10
      %s13 = sshll.u32 [#allocation3], 4
      %s14 = int_to_ptr.vmem [resolvable:$true] %s13
      %16 = dma.hbm_to_vmem [thread:$0]  %s0, 128, %s14, [#allocation4]
    $region5: #{tpu_custom_call.1} parent=1 // pred_fallthru
      _
    // Predicated region
    $region6: #{tpu_custom_call.1} parent=1 // pred_check
      _
    $region7: #{tpu_custom_call.1} parent=1 // pred_check_branch
      %18 = sbr.rel (0) target = $region9
    $region8: #{tpu_custom_call.1} parent=1 // pred_region
      %19 = dma.done [#allocation4], 128
    $region9: #{tpu_custom_call.1} parent=1 // pred_fallthru
      _
    %p20 = scmp.eq.s32.totalorder 0, 0
    // Predicated region
    $region10: #{tpu_custom_call.1} parent=1 // pred_check
      %p21 = pneg %p20
    $region11: #{tpu_custom_call.1} parent=1 // pred_check_branch
      %23 = sbr.rel (%p21) target = $region13
    $region12: #{tpu_custom_call.1} parent=1 // pred_region
      %24 = vst [vmem:[#allocation2] sm:$0xff] 0.0
    $region13: #{tpu_custom_call.1} parent=1 // pred_fallthru
      _
    %v25 = vld [vmem:[#allocation3] sm:$0xff]
    %s26 = smul.u32 0, 128
    %s27 = sadd.s32 %s26, 0
    %v28 = vlaneseq
    %v29 = vand.u32 %v28, 127
    %v30 = vstv %s27
    %v31 = vadd.s32 %v30, %v29
    %vm32 = vcmp.lt.s32.totalorder %v31, 16
    %v33 = vsel %vm32, %v25, 0.0
    %v34 = vmul.f32 %v33, %v33
    %v35 = vadd.f32 %v34, 0.0
    %v36 = vld [vmem:[#allocation2] sm:$0xff]
    %v37 = vadd.f32 %v36, %v35
    %38 = vst [vmem:[#allocation2] sm:$0xff] %v37
    // Predicated region
    $region14: #{tpu_custom_call.1} parent=1 // pred_check
      %p39 = pneg %p20
    $region15: #{tpu_custom_call.1} parent=1 // pred_check_branch
      %41 = sbr.rel (%p39) target = $region17
    $region16: #{tpu_custom_call.1} parent=1 // pred_region
      %v42 = vld [vmem:[#allocation2] sm:$0xff]
      %43 = vadd.xlane.f32.xlu0 %v42
      %v44 = vpop.xlane.xlu0 %43
      %v45 = vadd.f32 %v44, 0.001
      %v46 = vlog2.pop %v45
      %v47 = vmul.f32 %v46, 0.6931472
      %v48 = vmul.f32 %v47, 0.4342945
      %v49 = vmul.f32 %v48, 10.0
      %vm50 = vcmask 7168
      %51 = vst.msk [vmem:[%s1] sm:$0xff] %vm50, %v49
    $region17: #{tpu_custom_call.1} parent=1 // pred_fallthru
      _
    // Predicated region
    $region18: #{tpu_custom_call.1} parent=1 // pred_check
      _
    $region19: #{tpu_custom_call.1} parent=1 // pred_check_branch
      %53 = sbr.rel (0) target = $region21
    $region20: #{tpu_custom_call.1} parent=1 // pred_region
      _
    $region21: #{tpu_custom_call.1} parent=1 // pred_fallthru
      _
    // Predicated region
    $region22: #{tpu_custom_call.1} parent=1 // pred_check
      _
    $region23: #{tpu_custom_call.1} parent=1 // pred_check_branch
      %55 = sbr.rel (0) target = $region25
    $region24: #{tpu_custom_call.1} parent=1 // pred_region
      _
    $region25: #{tpu_custom_call.1} parent=1 // pred_fallthru
      _
    %56 = vsyncpa [#allocation4], 1

</llo_original>
